<compile_context>
chip_gen: v5e
topology: v5e:2x2
jax: 0.10.0
libtpu: 0.0.40
codegen_flags: <defaults>
</compile_context>

<pallas_src>
import functools

import jax
import jax.numpy as jnp
from jax.experimental import pallas as pl
from jax.experimental.pallas import tpu as pltpu

_LANES = 128
_TARGET_BLOCK_BYTES = 1 << 20  # ~1 MiB per (row_tile, 128) block


def _make_tonemap_kernel(gain: float):
    gain_f = float(gain)

    def kernel(x_ref, o_ref):
        y = x_ref[...] * gain_f            # weak-typed scalar: stays in x dtype
        o_ref[...] = jnp.clip(y, 0.0, 1.0).astype(o_ref.dtype)

    return kernel


def _clip_ref(x: jax.Array, gain: float) -> jax.Array:
    return jnp.clip(x * gain, 0.0, 1.0).astype(x.dtype)


@functools.partial(jax.jit, static_argnames=("gain",))
def default_tonemapper(x: jax.Array, gain: float = 1.0) -> jax.Array:
    """y = clamp(x * gain, 0, 1). Works for any shape; NCHW in practice."""
    orig_shape = x.shape
    dtype = x.dtype
    itemsize = jnp.dtype(dtype).itemsize

    # dtype-aware min sublane tile: 8 (f32), 16 (bf16/f16), 32 (int8/fp8)
    subl = max(8, 32 // itemsize)
    tile_elems = _LANES * subl

    x_flat = x.reshape(-1)
    n = x_flat.size
    n_bulk = (n // tile_elems) * tile_elems

    if n_bulk == 0:
        # Tiny input: no aligned bulk worth a kernel launch.
        return _clip_ref(x_flat, gain).reshape(orig_shape)

    rows = n_bulk // _LANES

    # ~1 MiB blocks, rounded to a multiple of the sublane tile.
    target_rows = max(subl, _TARGET_BLOCK_BYTES // (_LANES * itemsize))
    target_rows = (target_rows // subl) * subl
    row_tile = min(rows, target_rows)
    grid = (pl.cdiv(rows, row_tile),)

    x2d = x_flat[:n_bulk].reshape(rows, _LANES)

    out2d = pl.pallas_call(
        _make_tonemap_kernel(gain),
        out_shape=jax.ShapeDtypeStruct((rows, _LANES), dtype),
        grid_spec=pltpu.PrefetchScalarGridSpec(
            num_scalar_prefetch=0,
            grid=grid,
            in_specs=[pl.BlockSpec((row_tile, _LANES), lambda i: (i, 0))],
            out_specs=pl.BlockSpec((row_tile, _LANES), lambda i: (i, 0)),
        ),
        compiler_params=pltpu.CompilerParams(
            dimension_semantics=("parallel",),
        ),
    )(x2d)

    out_bulk = out2d.reshape(-1)
    if n_bulk == n:
        return out_bulk.reshape(orig_shape)

    # Handle the (< tile_elems) unaligned tail with plain jnp ops — no padded
    # full-tensor copy of the bulk.
    tail = _clip_ref(x_flat[n_bulk:], gain)
    return jnp.concatenate([out_bulk, tail]).reshape(orig_shape)


if __name__ == "__main__":
    key = jax.random.PRNGKey(0)
    gain = 1.5

    # 1) Main case: NCHW f32, values spanning negative / >1 to exercise the clamp.
    x = jax.random.normal(key, (2, 4, 16, 16), dtype=jnp.float32) * 2.0
    y = jax.block_until_ready(default_tonemapper(x, gain=gain))
    y_ref = jnp.clip(x * gain, 0.0, 1.0)
    assert y.shape == x.shape and y.dtype == x.dtype
    assert jnp.allclose(y, y_ref, atol=1e-6), "f32 mismatch vs reference"

    # 2) bf16 input (dtype-aware sublane tiling + explicit output cast).
    xb = (jax.random.normal(jax.random.PRNGKey(1), (2, 4, 16, 16)) * 2.0).astype(jnp.bfloat16)
    yb = jax.block_until_ready(default_tonemapper(xb, gain=gain))
    yb_ref = jnp.clip(xb * gain, 0.0, 1.0).astype(jnp.bfloat16)
    assert yb.dtype == jnp.bfloat16
    assert jnp.allclose(yb.astype(jnp.float32), yb_ref.astype(jnp.float32), atol=1e-2)

    # 3) Unaligned element count (exercises the bulk-kernel + jnp tail path).
    xt = jax.random.normal(jax.random.PRNGKey(2), (3, 5, 7, 11), dtype=jnp.float32) * 2.0
    yt = jax.block_until_ready(default_tonemapper(xt, gain=gain))
    yt_ref = jnp.clip(xt * gain, 0.0, 1.0)
    assert yt.shape == xt.shape
    assert jnp.allclose(yt, yt_ref, atol=1e-6), "tail-path mismatch vs reference"

    print("KERNEL_OK")
</pallas_src>

<mosaic_0001>
module attributes {stable_mosaic.version = 11 : i64} {
  func.func @kernel(%arg0: i32, %arg1: memref<16x128xf32, #tpu.memory_space<vmem>>, %arg2: memref<16x128xf32, #tpu.memory_space<vmem>>) attributes {dimension_semantics = [#tpu.dimension_semantics<parallel>], iteration_bounds = array<i64: 1>, scalar_prefetch = 0 : i64, scratch_operands = 0 : i64, tpu.core_type = #tpu.core_type<tc>, window_params = [{transform_indices = @transform_0, window_bounds = array<i64: 16, 128>}, {transform_indices = @transform_1, window_bounds = array<i64: 16, 128>}]} {
    %c0 = arith.constant 0 : index
    %c0_0 = arith.constant 0 : index
    %0 = vector.load %arg1[%c0, %c0_0] : memref<16x128xf32, #tpu.memory_space<vmem>>, vector<16x128xf32>
    %cst = arith.constant 1.500000e+00 : f32
    %1 = vector.broadcast %cst : f32 to vector<16x128xf32>
    %2 = arith.mulf %0, %1 : vector<16x128xf32>
    %cst_1 = arith.constant 0.000000e+00 : f32
    %cst_2 = arith.constant 1.000000e+00 : f32
    %3 = vector.broadcast %cst_1 : f32 to vector<16x128xf32>
    %4 = arith.maximumf %3, %2 : vector<16x128xf32>
    %5 = vector.broadcast %cst_2 : f32 to vector<16x128xf32>
    %6 = arith.minimumf %5, %4 : vector<16x128xf32>
    %c0_3 = arith.constant 0 : index
    %c0_4 = arith.constant 0 : index
    %7 = vector.load %arg2[%c0_3, %c0_4] : memref<16x128xf32, #tpu.memory_space<vmem>>, vector<16x128xf32>
    tpu.vector_store %arg2[%c0_3, %c0_4], %6 {strides = array<i32>} : memref<16x128xf32, #tpu.memory_space<vmem>>, vector<16x128xf32>,
    return
  }
  func.func @transform_0(%arg0: i32) -> (i32, i32) {
    %c0_i32 = arith.constant 0 : i32
    %c0_i32_0 = arith.constant 0 : i32
    return %arg0, %c0_i32 : i32, i32
  }
  func.func @transform_1(%arg0: i32) -> (i32, i32) {
    %c0_i32 = arith.constant 0 : i32
    %c0_i32_0 = arith.constant 0 : i32
    return %arg0, %c0_i32 : i32, i32
  }
}

</mosaic_0001>

<llo_original>
// kernel: default_tonemapper.1
$region0: #{default_tonemapper.1}
  #allocation0 [shape = 'u32[]', space=smem, size = 0x4, offset = 0x4, fixed_abs, tag = 'smem constant byte address 0x4 - core index']
  #allocation1 [shape = 'u32[72,128]{1,0:T(1,128)}', space=vmem, size = 0x9000, scoped, tag = 'internal scratch']
  %s0 = inlined_call_operand.vmem [shape: f32[16,128], index: 0, kind: input, shape index: {}]
  %s1 = inlined_call_operand.vmem [shape: f32[16,128], index: 1, kind: output, shape index: {}]
  %s2 = sld [smem:[#allocation0]]
  $region14: #{default_tonemapper.1} parent=0
    _
  %s4 = ssub.s32 1, %s2
  %s5 = scalar_select 0, %s4, %s2
  // Predicated region
  $region2: #{default_tonemapper.1} parent=0 // pred_check
    _
  $region3: #{default_tonemapper.1} parent=0 // pred_check_branch
    %7 = sbr.rel (0) target = $region5
  $region4: #{default_tonemapper.1} parent=0 // pred_region
    _
  $region5: #{default_tonemapper.1} parent=0 // pred_fallthru
    _
  %v8 = vld [vmem:[%s0] sm:$0xff]
  %v9 = vld [vmem:[%s0 + $0x8] sm:$0xff]
  %v10 = vmul.f32 %v8, 1.5
  %v11 = vmul.f32 %v9, 1.5
  %v12 = vmax.f32 %v10, 0.0
  %v13 = vmax.f32 %v11, 0.0
  %v14 = vmin.f32 %v12, 1.0
  %v15 = vmin.f32 %v13, 1.0
  %16 = vst [vmem:[%s1] sm:$0xff] %v14
  %17 = vst [vmem:[%s1 + $0x8] sm:$0xff] %v15
  // Predicated region
  $region6: #{default_tonemapper.1} parent=0 // pred_check
    _
  $region7: #{default_tonemapper.1} parent=0 // pred_check_branch
    %19 = sbr.rel (0) target = $region9
  $region8: #{default_tonemapper.1} parent=0 // pred_region
    _
  $region9: #{default_tonemapper.1} parent=0 // pred_fallthru
    _
  // Predicated region
  $region10: #{default_tonemapper.1} parent=0 // pred_check
    _
  $region11: #{default_tonemapper.1} parent=0 // pred_check_branch
    %21 = sbr.rel (0) target = $region13
  $region12: #{default_tonemapper.1} parent=0 // pred_region
    _
  $region13: #{default_tonemapper.1} parent=0 // pred_fallthru
    _

</llo_original>
